<compile_context>
chip_gen: v5e
topology: v5e:2x2
jax: 0.10.0
libtpu: 0.0.40
codegen_flags: <defaults>
</compile_context>

<pallas_src>
import functools

import jax
import jax.numpy as jnp
from jax.experimental import pallas as pl
from jax.experimental.pallas import tpu as pltpu


# ---------------------------------------------------------------------------
# Chip-aware budgets
# ---------------------------------------------------------------------------
@functools.lru_cache(maxsize=1)
def _chip_budgets():
    """Returns (per-tile input byte budget, vmem_limit_bytes) for this TPU."""
    vmem_cap = 64 * 1024 * 1024          # conservative default (v7x-sized VMEM)
    try:
        info = pltpu.get_tpu_info()
        vmem_cap = int(getattr(info, "vmem_capacity_bytes", vmem_cap))
    except Exception:
        pass
    if vmem_cap <= 64 * 1024 * 1024:
        # v7x-class: only 64 MiB physical VMEM -> smaller tiles, tighter limit.
        return 3 * 1024 * 1024, 48 * 1024 * 1024
    # v5e / v6e: 128 MiB physical VMEM -> bigger tiles amortize ~0.35us/step.
    return 6 * 1024 * 1024, 64 * 1024 * 1024


def _round_up(x, m):
    return (x + m - 1) // m * m


def _pick_tile_f(F, B, itemsize, max_tile_bytes):
    """Largest multiple of 128 that divides F and fits the per-tile budget."""
    if F % 128 != 0:
        return None
    # VMEM holds ~2x input + 2x output double buffers plus ~2 tile-sized f32
    # temporaries; the budget below is per single input tile.
    max_tile_f = max(128, (max_tile_bytes // (B * itemsize)) // 128 * 128)
    t = min(F, max_tile_f)
    t -= t % 128
    while t >= 128:
        if F % t == 0:
            return t
        t -= 128
    return 128  # 128 always divides F when F % 128 == 0


# ---------------------------------------------------------------------------
# Kernels
# ---------------------------------------------------------------------------
def _copy_stats_kernel(x_ref, o_ref, psum_ref, *, alpha, inv_b):
    """Pass x through and accumulate this core's partial sum(std).

    x_ref:    (B, TILE_F) input block (original dtype)
    o_ref:    (B, TILE_F) block of the flat (B, F + HW) output (x copy)
    psum_ref: (1, 8, 128) f32 per-core partial-sum block (resident across axis 1)
    """
    i = pl.program_id(1)

    @pl.when(i == 0)
    def _init():
        psum_ref[...] = jnp.zeros_like(psum_ref)

    x = x_ref[...]
    o_ref[...] = x                           # lane-dense copy, no f32 round-trip

    # One-pass f32 moments: only one B x TILE_F f32 temp stays live (no centered
    # copy).  E[x^2] - E[x]^2 can cancel for large-mean / tiny-variance data;
    # guarded with max(var, 0), fine for this layer (alpha = 1e-8).
    xf = x.astype(jnp.float32)
    mean = jnp.sum(xf, axis=0, keepdims=True) * inv_b          # (1, TILE_F)
    ex2 = jnp.sum(xf * xf, axis=0, keepdims=True) * inv_b      # (1, TILE_F)
    var = jnp.maximum(ex2 - mean * mean, 0.0)
    std = jnp.sqrt(var + alpha)
    psum_ref[...] += jnp.sum(std)            # scalar broadcast-add into block


def _tail_fill_kernel(s_ref, flat_ref, o_ref, *, cols):
    """Broadcast the final scalar into the stddev-channel tail columns.

    s_ref:    (1, 1) f32 scalar mean(std) in SMEM
    flat_ref: aliased HBM ref of the flat output (never touched; aliasing keeps
              the x pass-through written by the first kernel intact)
    o_ref:    (B, TILE_F) tail block; only the first `cols` lanes are in-bounds
    """
    del flat_ref
    s = s_ref[0, 0]
    val = jnp.broadcast_to(s, (o_ref.shape[0], cols)).astype(o_ref.dtype)
    if cols == o_ref.shape[1]:
        o_ref[...] = val
    else:
        o_ref[:, :cols] = val                # rest of block is clipped by Pallas


def _stats_only_kernel(x_ref, psum_ref, *, alpha, inv_b, f_total, tile_f):
    """Fallback stats kernel for F not a multiple of 128 (lane-masked)."""
    i = pl.program_id(0)

    @pl.when(i == 0)
    def _init():
        psum_ref[...] = jnp.zeros_like(psum_ref)

    xf = x_ref[...].astype(jnp.float32)
    mean = jnp.sum(xf, axis=0, keepdims=True) * inv_b
    ex2 = jnp.sum(xf * xf, axis=0, keepdims=True) * inv_b
    var = jnp.maximum(ex2 - mean * mean, 0.0)
    std = jnp.sqrt(var + alpha)
    col = i * tile_f + jax.lax.broadcasted_iota(jnp.int32, std.shape, 1)
    std = jnp.where(col < f_total, std, 0.0)   # mask clipped / padded lanes
    psum_ref[...] += jnp.sum(std)


# ---------------------------------------------------------------------------
# Wrapper
# ---------------------------------------------------------------------------
@functools.partial(jax.jit, static_argnames=("alpha",))
def minibatch_stddev(x, alpha=1e-8):
    """x: (B, C, H, W) float array -> (B, C+1, H, W)."""
    B, C, H, W = x.shape
    HW = H * W
    F = C * HW
    out_w = F + HW
    itemsize = x.dtype.itemsize
    inv_b = 1.0 / float(B)
    inv_f = 1.0 / float(F)
    alpha = float(alpha)

    tile_budget, vmem_limit = _chip_budgets()
    xf2d = x.reshape(B, F)
    tile_f = _pick_tile_f(F, B, itemsize, tile_budget)

    if tile_f is None:
        # Rare shapes (F not a multiple of 128): pipelined stats-only kernel
        # (no giant single-block VMEM load) + XLA concatenate.
        t = max(128, min(_round_up(F, 128),
                         (tile_budget // (B * itemsize)) // 128 * 128))
        n_blocks = pl.cdiv(F, t)
        psum = pl.pallas_call(
            functools.partial(_stats_only_kernel, alpha=alpha, inv_b=inv_b,
                              f_total=F, tile_f=t),
            out_shape=jax.ShapeDtypeStruct((8, 128), jnp.float32),
            grid_spec=pltpu.PrefetchScalarGridSpec(
                num_scalar_prefetch=0,
                grid=(n_blocks,),
                in_specs=[pl.BlockSpec((B, t), lambda i: (0, i))],
                out_specs=pl.BlockSpec((8, 128), lambda i: (0, 0)),
            ),
            compiler_params=pltpu.CompilerParams(
                dimension_semantics=("arbitrary",),
                vmem_limit_bytes=vmem_limit),
        )(xf2d)
        s = psum[0, 0] * inv_f
        smap = jnp.full((B, 1, H, W), s, dtype=x.dtype)
        return jnp.concatenate([x, smap], axis=1)

    n_f = F // tile_f
    # v7x: shard the x-tile range over both TensorCores (leading "parallel"
    # axis); each core owns a private partial-sum block.  Sequential and
    # harmless on single-TensorCore chips.
    n_cores = 2 if (n_f >= 2 and n_f % 2 == 0) else 1
    n_inner = n_f // n_cores

    cost = pl.CostEstimate(
        flops=int(5 * B * F),
        transcendentals=int(F),
        bytes_accessed=int(B * F * itemsize + B * out_w * itemsize),
    )

    flat, psums = pl.pallas_call(
        functools.partial(_copy_stats_kernel, alpha=alpha, inv_b=inv_b),
        out_shape=(
            jax.ShapeDtypeStruct((B, out_w), x.dtype),
            jax.ShapeDtypeStruct((n_cores, 8, 128), jnp.float32),
        ),
        grid_spec=pltpu.PrefetchScalarGridSpec(
            num_scalar_prefetch=0,
            grid=(n_cores, n_inner),
            in_specs=[pl.BlockSpec((B, tile_f),
                                   lambda c, i: (0, c * n_inner + i))],
            out_specs=(
                pl.BlockSpec((B, tile_f), lambda c, i: (0, c * n_inner + i)),
                pl.BlockSpec((1, 8, 128), lambda c, i: (c, 0, 0)),
            ),
        ),
        compiler_params=pltpu.CompilerParams(
            dimension_semantics=("parallel", "arbitrary"),
            vmem_limit_bytes=vmem_limit),
        cost_estimate=cost,
    )(xf2d)

    # Combine per-core partials into the scalar mean(std).
    s2d = (jnp.sum(psums[:, 0, 0]) * inv_f).reshape(1, 1)

    # Fill only the stddev-channel tail of the SAME buffer (input/output
    # aliased), so the x copy written above is never re-written.  Only the
    # valid (rounded-to-128) tail columns are stored; the rest of the partial
    # last block is clipped by Pallas on writeback.
    n_tail = pl.cdiv(HW, tile_f)
    cols = tile_f if n_tail > 1 else min(tile_f, _round_up(HW, 128))

    out_flat = pl.pallas_call(
        functools.partial(_tail_fill_kernel, cols=cols),
        out_shape=jax.ShapeDtypeStruct((B, out_w), x.dtype),
        grid_spec=pltpu.PrefetchScalarGridSpec(
            num_scalar_prefetch=0,
            grid=(n_tail,),
            in_specs=[
                pl.BlockSpec(memory_space=pltpu.MemorySpace.SMEM),
                pl.BlockSpec(memory_space=pl.ANY),
            ],
            out_specs=pl.BlockSpec((B, tile_f), lambda i: (0, n_f + i)),
        ),
        compiler_params=pltpu.CompilerParams(
            dimension_semantics=("arbitrary",),
            vmem_limit_bytes=vmem_limit),
        input_output_aliases={1: 0},
    )(s2d, flat)

    # Row-major reshape: first C*H*W lanes per row are x, trailing H*W lanes are
    # the constant stddev channel -> exactly torch.cat([x, y], dim=1).
    return out_flat.reshape(B, C + 1, H, W)


def _reference(x, alpha=1e-8):
    y = x - jnp.mean(x, axis=0, keepdims=True)
    y = jnp.sqrt(jnp.mean(y ** 2, axis=0) + alpha)
    s = jnp.mean(y)
    smap = jnp.full((x.shape[0], 1, x.shape[2], x.shape[3]), s, dtype=x.dtype)
    return jnp.concatenate([x, smap], axis=1)


if __name__ == "__main__":
    key = jax.random.PRNGKey(0)
    B, C, H, W = 2, 4, 16, 16
    x = jax.random.normal(key, (B, C, H, W), dtype=jnp.float32)

    out = jax.block_until_ready(minibatch_stddev(x))

    ref = _reference(x)
    assert out.shape == (B, C + 1, H, W)
    assert jnp.allclose(out, ref, atol=1e-5, rtol=1e-5), (
        float(jnp.max(jnp.abs(out - ref))))

    print("KERNEL_OK")
</pallas_src>

<mosaic_0001>
module attributes {stable_mosaic.version = 11 : i64} {
  func.func @_tail_fill_kernel(%arg0: i32, %arg1: memref<1x1xf32, #tpu.memory_space<smem>>, %arg2: memref<2x1280xf32, #tpu.memory_space<any>>, %arg3: memref<2x1024xf32, #tpu.memory_space<vmem>>) attributes {dimension_semantics = [#tpu.dimension_semantics<arbitrary>], iteration_bounds = array<i64: 1>, scalar_prefetch = 0 : i64, scratch_operands = 0 : i64, tpu.core_type = #tpu.core_type<tc>, window_params = [{transform_indices = @transform_0, window_bounds = array<i64: 1, 1>}, {}, {transform_indices = @transform_2, window_bounds = array<i64: 2, 1024>}]} {
    %c0 = arith.constant 0 : index
    %c0_0 = arith.constant 0 : index
    %0 = memref.load %arg1[%c0, %c0_0] : memref<1x1xf32, #tpu.memory_space<smem>>
    %1 = vector.broadcast %0 : f32 to vector<2x256xf32>
    %c0_1 = arith.constant 0 : index
    %c0_2 = arith.constant 0 : index
    %2 = vector.load %arg3[%c0_1, %c0_2] : memref<2x1024xf32, #tpu.memory_space<vmem>>, vector<2x256xf32>
    tpu.vector_store %arg3[%c0_1, %c0_2], %1 {strides = array<i32>} : memref<2x1024xf32, #tpu.memory_space<vmem>>, vector<2x256xf32>,
    return
  }
  func.func @transform_0(%arg0: i32) -> (i32, i32) {
    %c0_i32 = arith.constant 0 : i32
    %c0_i32_0 = arith.constant 0 : i32
    %c0_i32_1 = arith.constant 0 : i32
    return %c0_i32, %c0_i32_0 : i32, i32
  }
  func.func @transform_2(%arg0: i32) -> (i32, i32) {
    %c1_i32 = arith.constant 1 : i32
    %0 = arith.addi %c1_i32, %arg0 : i32
    %c0_i32 = arith.constant 0 : i32
    %c0_i32_0 = arith.constant 0 : i32
    return %c0_i32, %0 : i32, i32
  }
}

module attributes {stable_mosaic.version = 11 : i64} {
  func.func @_copy_stats_kernel(%arg0: i32, %arg1: i32, %arg2: memref<2x1024xf32, #tpu.memory_space<vmem>>, %arg3: memref<2x1024xf32, #tpu.memory_space<vmem>>, %arg4: memref<1x8x128xf32, #tpu.memory_space<vmem>>) attributes {dimension_semantics = [#tpu.dimension_semantics<parallel>, #tpu.dimension_semantics<arbitrary>], iteration_bounds = array<i64: 1, 1>, scalar_prefetch = 0 : i64, scratch_operands = 0 : i64, tpu.core_type = #tpu.core_type<tc>, window_params = [{transform_indices = @transform_0, window_bounds = array<i64: 2, 1024>}, {transform_indices = @transform_1, window_bounds = array<i64: 2, 1024>}, {transform_indices = @transform_2, window_bounds = array<i64: 1, 8, 128>}]} {
    %c0_i32 = arith.constant 0 : i32
    %0 = arith.cmpi eq, %arg1, %c0_i32 : i32
    %1 = arith.extui %0 : i1 to i32
    %c0_i32_0 = arith.constant 0 : i32
    %2 = arith.cmpi ne, %1, %c0_i32_0 : i32
    scf.if %2 {
      %cst_16 = arith.constant 0.000000e+00 : f32
      %29 = vector.broadcast %cst_16 : f32 to vector<1x8x128xf32>
      %c0_17 = arith.constant 0 : index
      %c0_18 = arith.constant 0 : index
      %c0_19 = arith.constant 0 : index
      %30 = vector.load %arg4[%c0_17, %c0_18, %c0_19] : memref<1x8x128xf32, #tpu.memory_space<vmem>>, vector<1x8x128xf32>
      tpu.vector_store %arg4[%c0_17, %c0_18, %c0_19], %29 {strides = array<i32>} : memref<1x8x128xf32, #tpu.memory_space<vmem>>, vector<1x8x128xf32>,
    } else {
    }
    %c0 = arith.constant 0 : index
    %c0_1 = arith.constant 0 : index
    %3 = vector.load %arg2[%c0, %c0_1] : memref<2x1024xf32, #tpu.memory_space<vmem>>, vector<2x1024xf32>
    %c0_2 = arith.constant 0 : index
    %c0_3 = arith.constant 0 : index
    %4 = vector.load %arg3[%c0_2, %c0_3] : memref<2x1024xf32, #tpu.memory_space<vmem>>, vector<2x1024xf32>
    tpu.vector_store %arg3[%c0_2, %c0_3], %3 {strides = array<i32>} : memref<2x1024xf32, #tpu.memory_space<vmem>>, vector<2x1024xf32>,
    %cst = arith.constant dense<0.000000e+00> : vector<1024xf32>
    %5 = vector.multi_reduction <add>, %3, %cst [0] : vector<2x1024xf32> to vector<1024xf32>
    %6 = vector.shape_cast %5 : vector<1024xf32> to vector<1x1024xf32>
    %cst_4 = arith.constant 5.000000e-01 : f32
    %7 = vector.broadcast %cst_4 : f32 to vector<1x1024xf32>
    %8 = arith.mulf %6, %7 : vector<1x1024xf32>
    %9 = arith.mulf %3, %3 : vector<2x1024xf32>
    %cst_5 = arith.constant dense<0.000000e+00> : vector<1024xf32>
    %10 = vector.multi_reduction <add>, %9, %cst_5 [0] : vector<2x1024xf32> to vector<1024xf32>
    %11 = vector.shape_cast %10 : vector<1024xf32> to vector<1x1024xf32>
    %cst_6 = arith.constant 5.000000e-01 : f32
    %12 = vector.broadcast %cst_6 : f32 to vector<1x1024xf32>
    %13 = arith.mulf %11, %12 : vector<1x1024xf32>
    %14 = arith.mulf %8, %8 : vector<1x1024xf32>
    %15 = arith.subf %13, %14 : vector<1x1024xf32>
    %cst_7 = arith.constant 0.000000e+00 : f32
    %16 = vector.broadcast %cst_7 : f32 to vector<1x1024xf32>
    %17 = arith.maximumf %15, %16 : vector<1x1024xf32>
    %cst_8 = arith.constant 9.99999993E-9 : f32
    %18 = vector.broadcast %cst_8 : f32 to vector<1x1024xf32>
    %19 = arith.addf %17, %18 : vector<1x1024xf32>
    %20 = math.sqrt %19 : vector<1x1024xf32>
    %c0_9 = arith.constant 0 : index
    %c0_10 = arith.constant 0 : index
    %c0_11 = arith.constant 0 : index
    %21 = vector.load %arg4[%c0_9, %c0_10, %c0_11] : memref<1x8x128xf32, #tpu.memory_space<vmem>>, vector<1x8x128xf32>
    %22 = vector.shape_cast %20 : vector<1x1024xf32> to vector<1x1x1024xf32>
    %cst_12 = arith.constant dense<0.000000e+00> : vector<1xf32>
    %23 = vector.multi_reduction <add>, %22, %cst_12 [1, 2] : vector<1x1x1024xf32> to vector<1xf32>
    %24 = vector.shape_cast %23 : vector<1xf32> to vector<1x1x1xf32>
    %25 = vector.extract %24[0, 0, 0] : f32 from vector<1x1x1xf32>
    %26 = vector.broadcast %25 : f32 to vector<1x8x128xf32>
    %27 = arith.addf %21, %26 : vector<1x8x128xf32>
    %c0_13 = arith.constant 0 : index
    %c0_14 = arith.constant 0 : index
    %c0_15 = arith.constant 0 : index
    %28 = vector.load %arg4[%c0_13, %c0_14, %c0_15] : memref<1x8x128xf32, #tpu.memory_space<vmem>>, vector<1x8x128xf32>
    tpu.vector_store %arg4[%c0_13, %c0_14, %c0_15], %27 {strides = array<i32>} : memref<1x8x128xf32, #tpu.memory_space<vmem>>, vector<1x8x128xf32>,
    return
  }
  func.func @transform_0(%arg0: i32, %arg1: i32) -> (i32, i32) {
    %c1_i32 = arith.constant 1 : i32
    %0 = arith.muli %arg0, %c1_i32 : i32
    %1 = arith.addi %0, %arg1 : i32
    %c0_i32 = arith.constant 0 : i32
    %c0_i32_0 = arith.constant 0 : i32
    return %c0_i32, %1 : i32, i32
  }
  func.func @transform_1(%arg0: i32, %arg1: i32) -> (i32, i32) {
    %c1_i32 = arith.constant 1 : i32
    %0 = arith.muli %arg0, %c1_i32 : i32
    %1 = arith.addi %0, %arg1 : i32
    %c0_i32 = arith.constant 0 : i32
    %c0_i32_0 = arith.constant 0 : i32
    return %c0_i32, %1 : i32, i32
  }
  func.func @transform_2(%arg0: i32, %arg1: i32) -> (i32, i32, i32) {
    %c0_i32 = arith.constant 0 : i32
    %c0_i32_0 = arith.constant 0 : i32
    %c0_i32_1 = arith.constant 0 : i32
    return %arg0, %c0_i32, %c0_i32_0 : i32, i32, i32
  }
}

</mosaic_0001>

<llo_original>
// kernel: minibatch_stddev.3
$region0: #{minibatch_stddev.3}
  #allocation0 [shape = 'u32[]', space=smem, size = 0x4, offset = 0x4, fixed_abs, tag = 'smem constant byte address 0x4 - core index']
  #allocation1 [shape = 'u32[72,128]{1,0:T(1,128)}', space=vmem, size = 0x9000, scoped, tag = 'internal scratch']
  #allocation2 [shape = 'f32[1,1]{1,0:T(1,128)S(6)}', space=smem, size = 0x200, scoped, tag = 'scoped memory for minibatch_stddev.3']
  %s0 = inlined_call_operand.<no memory space> [shape: f32[1,1], index: 0, kind: input, shape index: {}]
  %s1 = inlined_call_operand.vmem [shape: f32[2,1280], index: 1, kind: input, shape index: {}, may-alias: {1,2}]
  %s2 = inlined_call_operand.vmem [shape: f32[2,1280], index: 2, kind: output, shape index: {}, may-alias: {1,2}]
  %s3 = sld [smem:[#allocation0]]
  $region76: #{minibatch_stddev.3} parent=0
    _
  %s5 = ssub.s32 1, %s3
  %s6 = scalar_select 0, %s5, %s3
  %7 = sst [smem:[#allocation2]] %s0
  $region1: #{minibatch_stddev.3} parent=0
    #allocation3 [shape = 'u8[8192]{0}', space=vmem, size = 0x2000, scoped, tag = 'output window, operand 0, single buffered']
    // Predicated region
    $region2: #{minibatch_stddev.3} parent=1 // pred_check
      _
    $region3: #{minibatch_stddev.3} parent=1 // pred_check_branch
      %9 = sbr.rel (0) target = $region5
    $region4: #{minibatch_stddev.3} parent=1 // pred_region
      _
    $region5: #{minibatch_stddev.3} parent=1 // pred_fallthru
      _
    %s10 = sadd.s32 0, 1
    %s11 = smul.u32 8, %s10
    %s12 = ssub.s32 10, %s11
    %p13 = scmp.lt.s32.totalorder %s12, 8
    %s14 = scalar_select %p13, %s12, 8
    %s15 = smul.u32 2, %s14
    %s16 = sld [smem:[#allocation2]]
    %v17 = vstv %s16
    %18 = vst [vmem:[#allocation3] sm:$0xf] %v17
    // Predicated region
    $region6: #{minibatch_stddev.3} parent=1 // pred_check
      _
    $region7: #{minibatch_stddev.3} parent=1 // pred_check_branch
      %20 = sbr.rel (0) target = $region9
    $region8: #{minibatch_stddev.3} parent=1 // pred_region
      %s21 = sadd.s32 0, 1
      %s22 = smul.u32 8, %s21
      %s23 = ssub.s32 10, %s22
      %p24 = scmp.lt.s32.totalorder %s23, 8
      %s25 = scalar_select %p24, %s23, 8
      %s26 = smul.u32 2, %s25
      %p27 = scmp.ne.s32.totalorder 0, %s26
      %s28 = smul.addr %s22, 2
      %s29 = scalar_lea.vmem %s2, %s28
      %s30 = smul.u32 %s25, 2
      // Predicated region
      $region10: #{minibatch_stddev.3} parent=8 // pred_check
        %p31 = pneg %p27
      $region11: #{minibatch_stddev.3} parent=8 // pred_check_branch
        %33 = sbr.rel (%p31) target = $region13
      $region12: #{minibatch_stddev.3} parent=8 // pred_region
        %p34 = scmp.lt.u32.totalorder %s30, 8
        %p35 = pneg %p34
        // Predicated region
        $region14: #{minibatch_stddev.3} parent=12 // pred_check
          _
        $region15: #{minibatch_stddev.3} parent=12 // pred_check_branch
          %37 = sbr.rel (%p34) target = $region17
        $region16: #{minibatch_stddev.3} parent=12 // pred_region
          %s53 = sand.u32 %s30, 7
          %p54 = scmp.eq.s32.totalorder %s53, 0
          // Predicated region
          $region29: #{minibatch_stddev.3} parent=16 // pred_check
            %p55 = pneg %p54
          $region30: #{minibatch_stddev.3} parent=16 // pred_check_branch
            %57 = sbr.rel (%p55) target = $region32
          $region31: #{minibatch_stddev.3} parent=16 // pred_region
            %s58 = sshrl.u32 %s30, 3
            %s59 = sshrl.u32 %s58, 5
            // While loop
            $region33: #{minibatch_stddev.3} parent=31 // loop_pre_header
              _
            $region34: #{minibatch_stddev.3} parent=31 // loop_header
              %s61 = sphi 0, %s63
              %p62 = scmp.ge.s32.totalorder %s61, %s59
              %s66 = sphi 0, %s135
              %s67 = sphi [#allocation3], %s138
              %s68 = sphi %s29, %s139
            $region35: #{minibatch_stddev.3} parent=31 // loop_header_branch
              %65 = sbr.rel (%p62) target = $region39
            $region36: #{minibatch_stddev.3} parent=31 // loop_body
              %v69 = vld [vmem:[%s67] sm:$0xff]
              %70 = vst [vmem:[%s68] sm:$0xff] %v69
              %v71 = vld [vmem:[%s67 + $0x8] sm:$0xff]
              %72 = vst [vmem:[%s68 + $0x8] sm:$0xff] %v71
              %v73 = vld [vmem:[%s67 + $0x10] sm:$0xff]
              %74 = vst [vmem:[%s68 + $0x10] sm:$0xff] %v73
              %v75 = vld [vmem:[%s67 + $0x18] sm:$0xff]
              %76 = vst [vmem:[%s68 + $0x18] sm:$0xff] %v75
              %v77 = vld [vmem:[%s67 + $0x20] sm:$0xff]
              %78 = vst [vmem:[%s68 + $0x20] sm:$0xff] %v77
              %v79 = vld [vmem:[%s67 + $0x28] sm:$0xff]
              %80 = vst [vmem:[%s68 + $0x28] sm:$0xff] %v79
              %v81 = vld [vmem:[%s67 + $0x30] sm:$0xff]
              %82 = vst [vmem:[%s68 + $0x30] sm:$0xff] %v81
              %v83 = vld [vmem:[%s67 + $0x38] sm:$0xff]
              %84 = vst [vmem:[%s68 + $0x38] sm:$0xff] %v83
              %v85 = vld [vmem:[%s67 + $0x40] sm:$0xff]
              %86 = vst [vmem:[%s68 + $0x40] sm:$0xff] %v85
              %v87 = vld [vmem:[%s67 + $0x48] sm:$0xff]
              %88 = vst [vmem:[%s68 + $0x48] sm:$0xff] %v87
              %v89 = vld [vmem:[%s67 + $0x50] sm:$0xff]
              %90 = vst [vmem:[%s68 + $0x50] sm:$0xff] %v89
              %v91 = vld [vmem:[%s67 + $0x58] sm:$0xff]
              %92 = vst [vmem:[%s68 + $0x58] sm:$0xff] %v91
              %v93 = vld [vmem:[%s67 + $0x60] sm:$0xff]
              %94 = vst [vmem:[%s68 + $0x60] sm:$0xff] %v93
              %v95 = vld [vmem:[%s67 + $0x68] sm:$0xff]
              %96 = vst [vmem:[%s68 + $0x68] sm:$0xff] %v95
              %v97 = vld [vmem:[%s67 + $0x70] sm:$0xff]
              %98 = vst [vmem:[%s68 + $0x70] sm:$0xff] %v97
              %v99 = vld [vmem:[%s67 + $0x78] sm:$0xff]
              %100 = vst [vmem:[%s68 + $0x78] sm:$0xff] %v99
              %v101 = vld [vmem:[%s67 + $0x80] sm:$0xff]
              %102 = vst [vmem:[%s68 + $0x80] sm:$0xff] %v101
              %v103 = vld [vmem:[%s67 + $0x88] sm:$0xff]
              %104 = vst [vmem:[%s68 + $0x88] sm:$0xff] %v103
              %v105 = vld [vmem:[%s67 + $0x90] sm:$0xff]
              %106 = vst [vmem:[%s68 + $0x90] sm:$0xff] %v105
              %v107 = vld [vmem:[%s67 + $0x98] sm:$0xff]
              %108 = vst [vmem:[%s68 + $0x98] sm:$0xff] %v107
              %v109 = vld [vmem:[%s67 + $0xa0] sm:$0xff]
              %110 = vst [vmem:[%s68 + $0xa0] sm:$0xff] %v109
              %v111 = vld [vmem:[%s67 + $0xa8] sm:$0xff]
              %112 = vst [vmem:[%s68 + $0xa8] sm:$0xff] %v111
              %v113 = vld [vmem:[%s67 + $0xb0] sm:$0xff]
              %114 = vst [vmem:[%s68 + $0xb0] sm:$0xff] %v113
              %v115 = vld [vmem:[%s67 + $0xb8] sm:$0xff]
              %116 = vst [vmem:[%s68 + $0xb8] sm:$0xff] %v115
              %v117 = vld [vmem:[%s67 + $0xc0] sm:$0xff]
              %118 = vst [vmem:[%s68 + $0xc0] sm:$0xff] %v117
              %v119 = vld [vmem:[%s67 + $0xc8] sm:$0xff]
              %120 = vst [vmem:[%s68 + $0xc8] sm:$0xff] %v119
              %v121 = vld [vmem:[%s67 + $0xd0] sm:$0xff]
              %122 = vst [vmem:[%s68 + $0xd0] sm:$0xff] %v121
              %v123 = vld [vmem:[%s67 + $0xd8] sm:$0xff]
              %124 = vst [vmem:[%s68 + $0xd8] sm:$0xff] %v123
              %v125 = vld [vmem:[%s67 + $0xe0] sm:$0xff]
              %126 = vst [vmem:[%s68 + $0xe0] sm:$0xff] %v125
              %v127 = vld [vmem:[%s67 + $0xe8] sm:$0xff]
              %128 = vst [vmem:[%s68 + $0xe8] sm:$0xff] %v127
              %v129 = vld [vmem:[%s67 + $0xf0] sm:$0xff]
              %130 = vst [vmem:[%s68 + $0xf0] sm:$0xff] %v129
              %v131 = vld [vmem:[%s67 + $0xf8] sm:$0xff]
              %132 = vst [vmem:[%s68 + $0xf8] sm:$0xff] %v131
              %s133 = sadd.s32 1, %s66
              %p134 = scmp.ge.s32.totalorder %s133, %s59
              %s135 = scalar_select %p134, 0, %s133
              %s136 = smul.u32 %s135, 256
              %s137 = smul.u32 %s135, 256
              %s138 = scalar_lea.vmem [#allocation3], %s136
              %s139 = scalar_lea.vmem %s29, %s137
            $region37: #{minibatch_stddev.3} parent=31 // loop_footer
              %s63 = sadd.s32 %s61, 1
            $region38: #{minibatch_stddev.3} parent=31 // loop_footer_branch
              %60 = sbr.rel target = $region34
            $region39: #{minibatch_stddev.3} parent=31 // loop_exit
              _
            %s140 = sshrl.u32 %s58, 5
            %s141 = sand.u32 %s58, 31
            %s142 = smul.u32 %s140, 32
            %s143 = smul.u32 8, %s142
            %s144 = scalar_lea.vmem [#allocation3], %s143
            %s145 = smul.u32 8, %s142
            %s146 = scalar_lea.vmem %s29, %s145
            // While loop
            $region40: #{minibatch_stddev.3} parent=31 // loop_pre_header
              _
            $region41: #{minibatch_stddev.3} parent=31 // loop_header
              %s148 = sphi 0, %s150
              %p149 = scmp.ge.s32.totalorder %s148, %s141
              %s153 = sphi 0, %s160
              %s154 = sphi %s144, %s163
              %s155 = sphi %s146, %s164
            $region42: #{minibatch_stddev.3} parent=31 // loop_header_branch
              %152 = sbr.rel (%p149) target = $region46
            $region43: #{minibatch_stddev.3} parent=31 // loop_body
              %v156 = vld [vmem:[%s154] sm:$0xff]
              %157 = vst [vmem:[%s155] sm:$0xff] %v156
              %s158 = sadd.s32 1, %s153
              %p159 = scmp.ge.s32.totalorder %s158, %s141
              %s160 = scalar_select %p159, 0, %s158
              %s161 = smul.u32 %s160, 8
              %s162 = smul.u32 %s160, 8
              %s163 = scalar_lea.vmem %s144, %s161 [#allocation3]
              %s164 = scalar_lea.vmem %s146, %s162
            $region44: #{minibatch_stddev.3} parent=31 // loop_footer
              %s150 = sadd.s32 %s148, 1
            $region45: #{minibatch_stddev.3} parent=31 // loop_footer_branch
              %147 = sbr.rel target = $region41
            $region46: #{minibatch_stddev.3} parent=31 // loop_exit
              _
          $region32: #{minibatch_stddev.3} parent=16 // pred_fallthru
            _
          %p165 = pneg %p54
          // Predicated region
          $region47: #{minibatch_stddev.3} parent=16 // pred_check
            _
          $region48: #{minibatch_stddev.3} parent=16 // pred_check_branch
            %167 = sbr.rel (%p54) target = $region50
          $region49: #{minibatch_stddev.3} parent=16 // pred_region
            %s168 = sand.u32 %s30, 7
            %s169 = ssub.s32 %s30, %s168
            %s170 = scalar_lea.vmem [#allocation3], %s169
            %s171 = ssub.s32 %s30, %s168
            %s172 = scalar_lea.vmem %s29, %s171
            %s173 = sshrl.u32 %s30, 3
            %s174 = sshrl.u32 %s173, 5
            // While loop
            $region51: #{minibatch_stddev.3} parent=49 // loop_pre_header
              _
            $region52: #{minibatch_stddev.3} parent=49 // loop_header
              %s176 = sphi 0, %s178
              %p177 = scmp.ge.s32.totalorder %s176, %s174
              %s181 = sphi 0, %s250
              %s182 = sphi [#allocation3], %s253
              %s183 = sphi %s29, %s254
            $region53: #{minibatch_stddev.3} parent=49 // loop_header_branch
              %180 = sbr.rel (%p177) target = $region57
            $region54: #{minibatch_stddev.3} parent=49 // loop_body
              %v184 = vld [vmem:[%s182] sm:$0xff]
              %185 = vst [vmem:[%s183] sm:$0xff] %v184
              %v186 = vld [vmem:[%s182 + $0x8] sm:$0xff]
              %187 = vst [vmem:[%s183 + $0x8] sm:$0xff] %v186
              %v188 = vld [vmem:[%s182 + $0x10] sm:$0xff]
              %189 = vst [vmem:[%s183 + $0x10] sm:$0xff] %v188
              %v190 = vld [vmem:[%s182 + $0x18] sm:$0xff]
              %191 = vst [vmem:[%s183 + $0x18] sm:$0xff] %v190
              %v192 = vld [vmem:[%s182 + $0x20] sm:$0xff]
              %193 = vst [vmem:[%s183 + $0x20] sm:$0xff] %v192
              %v194 = vld [vmem:[%s182 + $0x28] sm:$0xff]
              %195 = vst [vmem:[%s183 + $0x28] sm:$0xff] %v194
              %v196 = vld [vmem:[%s182 + $0x30] sm:$0xff]
              %197 = vst [vmem:[%s183 + $0x30] sm:$0xff] %v196
              %v198 = vld [vmem:[%s182 + $0x38] sm:$0xff]
              %199 = vst [vmem:[%s183 + $0x38] sm:$0xff] %v198
              %v200 = vld [vmem:[%s182 + $0x40] sm:$0xff]
              %201 = vst [vmem:[%s183 + $0x40] sm:$0xff] %v200
              %v202 = vld [vmem:[%s182 + $0x48] sm:$0xff]
              %203 = vst [vmem:[%s183 + $0x48] sm:$0xff] %v202
              %v204 = vld [vmem:[%s182 + $0x50] sm:$0xff]
              %205 = vst [vmem:[%s183 + $0x50] sm:$0xff] %v204
              %v206 = vld [vmem:[%s182 + $0x58] sm:$0xff]
              %207 = vst [vmem:[%s183 + $0x58] sm:$0xff] %v206
              %v208 = vld [vmem:[%s182 + $0x60] sm:$0xff]
              %209 = vst [vmem:[%s183 + $0x60] sm:$0xff] %v208
              %v210 = vld [vmem:[%s182 + $0x68] sm:$0xff]
              %211 = vst [vmem:[%s183 + $0x68] sm:$0xff] %v210
              %v212 = vld [vmem:[%s182 + $0x70] sm:$0xff]
              %213 = vst [vmem:[%s183 + $0x70] sm:$0xff] %v212
              %v214 = vld [vmem:[%s182 + $0x78] sm:$0xff]
              %215 = vst [vmem:[%s183 + $0x78] sm:$0xff] %v214
              %v216 = vld [vmem:[%s182 + $0x80] sm:$0xff]
              %217 = vst [vmem:[%s183 + $0x80] sm:$0xff] %v216
              %v218 = vld [vmem:[%s182 + $0x88] sm:$0xff]
              %219 = vst [vmem:[%s183 + $0x88] sm:$0xff] %v218
              %v220 = vld [vmem:[%s182 + $0x90] sm:$0xff]
              %221 = vst [vmem:[%s183 + $0x90] sm:$0xff] %v220
              %v222 = vld [vmem:[%s182 + $0x98] sm:$0xff]
              %223 = vst [vmem:[%s183 + $0x98] sm:$0xff] %v222
              %v224 = vld [vmem:[%s182 + $0xa0] sm:$0xff]
              %225 = vst [vmem:[%s183 + $0xa0] sm:$0xff] %v224
              %v226 = vld [vmem:[%s182 + $0xa8] sm:$0xff]
              %227 = vst [vmem:[%s183 + $0xa8] sm:$0xff] %v226
              %v228 = vld [vmem:[%s182 + $0xb0] sm:$0xff]
              %229 = vst [vmem:[%s183 + $0xb0] sm:$0xff] %v228
              %v230 = vld [vmem:[%s182 + $0xb8] sm:$0xff]
              %231 = vst [vmem:[%s183 + $0xb8] sm:$0xff] %v230
              %v232 = vld [vmem:[%s182 + $0xc0] sm:$0xff]
              %233 = vst [vmem:[%s183 + $0xc0] sm:$0xff] %v232
              %v234 = vld [vmem:[%s182 + $0xc8] sm:$0xff]
              %235 = vst [vmem:[%s183 + $0xc8] sm:$0xff] %v234
              %v236 = vld [vmem:[%s182 + $0xd0] sm:$0xff]
              %237 = vst [vmem:[%s183 + $0xd0] sm:$0xff] %v236
              %v238 = vld [vmem:[%s182 + $0xd8] sm:$0xff]
              %239 = vst [vmem:[%s183 + $0xd8] sm:$0xff] %v238
              %v240 = vld [vmem:[%s182 + $0xe0] sm:$0xff]
              %241 = vst [vmem:[%s183 + $0xe0] sm:$0xff] %v240
              %v242 = vld [vmem:[%s182 + $0xe8] sm:$0xff]
              %243 = vst [vmem:[%s183 + $0xe8] sm:$0xff] %v242
              %v244 = vld [vmem:[%s182 + $0xf0] sm:$0xff]
              %245 = vst [vmem:[%s183 + $0xf0] sm:$0xff] %v244
              %v246 = vld [vmem:[%s182 + $0xf8] sm:$0xff]
              %247 = vst [vmem:[%s183 + $0xf8] sm:$0xff] %v246
              %s248 = sadd.s32 1, %s181
              %p249 = scmp.ge.s32.totalorder %s248, %s174
              %s250 = scalar_select %p249, 0, %s248
              %s251 = smul.u32 %s250, 256
              %s252 = smul.u32 %s250, 256
              %s253 = scalar_lea.vmem [#allocation3], %s251
              %s254 = scalar_lea.vmem %s29, %s252
            $region55: #{minibatch_stddev.3} parent=49 // loop_footer
              %s178 = sadd.s32 %s176, 1
            $region56: #{minibatch_stddev.3} parent=49 // loop_footer_branch
              %175 = sbr.rel target = $region52
            $region57: #{minibatch_stddev.3} parent=49 // loop_exit
              _
            %s255 = sshrl.u32 %s173, 5
            %s256 = sand.u32 %s173, 31
            %s257 = smul.u32 %s255, 32
            %s258 = smul.u32 8, %s257
            %s259 = scalar_lea.vmem [#allocation3], %s258
            %s260 = smul.u32 8, %s257
            %s261 = scalar_lea.vmem %s29, %s260
            // While loop
            $region58: #{minibatch_stddev.3} parent=49 // loop_pre_header
              _
            $region59: #{minibatch_stddev.3} parent=49 // loop_header
              %s263 = sphi 0, %s265
              %p264 = scmp.ge.s32.totalorder %s263, %s256
              %s268 = sphi 0, %s275
              %s269 = sphi %s259, %s278
              %s270 = sphi %s261, %s279
            $region60: #{minibatch_stddev.3} parent=49 // loop_header_branch
              %267 = sbr.rel (%p264) target = $region64
            $region61: #{minibatch_stddev.3} parent=49 // loop_body
              %v271 = vld [vmem:[%s269] sm:$0xff]
              %272 = vst [vmem:[%s270] sm:$0xff] %v271
              %s273 = sadd.s32 1, %s268
              %p274 = scmp.ge.s32.totalorder %s273, %s256
              %s275 = scalar_select %p274, 0, %s273
              %s276 = smul.u32 %s275, 8
              %s277 = smul.u32 %s275, 8
              %s278 = scalar_lea.vmem %s259, %s276 [#allocation3]
              %s279 = scalar_lea.vmem %s261, %s277
            $region62: #{minibatch_stddev.3} parent=49 // loop_footer
              %s265 = sadd.s32 %s263, 1
            $region63: #{minibatch_stddev.3} parent=49 // loop_footer_branch
              %262 = sbr.rel target = $region59
            $region64: #{minibatch_stddev.3} parent=49 // loop_exit
              _
            %s280 = sshll.u32 1, %s168
            %s281 = ssub.s32 %s280, 1
            loop: start=0, step=1, limit=1
            $region65: #{minibatch_stddev.3} parent=49 // loop_pre_header
              _
            $region66: #{minibatch_stddev.3} parent=49 // loop_header
              %s283 = sphi 0, %s287
              %p284 = scmp.ge.s32.totalorder %s283, 1
              %s288 = sphi %s170, %s170
              %s289 = sphi %s172, %s172
            $region67: #{minibatch_stddev.3} parent=49 // loop_header_branch
              %286 = sbr.rel (%p284) target = $region71
            $region68: #{minibatch_stddev.3} parent=49 // loop_body
              %v290 = vld [vmem:[%s288] sm:%s281]
              %291 = vst [vmem:[%s289] sm:%s281] %v290
            $region69: #{minibatch_stddev.3} parent=49 // loop_footer
              %s287 = sadd.s32 1, %s283
            $region70: #{minibatch_stddev.3} parent=49 // loop_footer_branch
              %282 = sbr.rel target = $region66
            $region71: #{minibatch_stddev.3} parent=49 // loop_exit
              _
          $region50: #{minibatch_stddev.3} parent=16 // pred_fallthru
            _
        $region17: #{minibatch_stddev.3} parent=12 // pred_fallthru
          _
        // Predicated region
        $region18: #{minibatch_stddev.3} parent=12 // pred_check
          %p38 = pneg %p34
        $region19: #{minibatch_stddev.3} parent=12 // pred_check_branch
          %40 = sbr.rel (%p38) target = $region21
        $region20: #{minibatch_stddev.3} parent=12 // pred_region
          %s41 = sshll.u32 1, %s30
          %s42 = ssub.s32 %s41, 1
          loop: start=0, step=1, limit=1
          $region22: #{minibatch_stddev.3} parent=20 // loop_pre_header
            _
          $region23: #{minibatch_stddev.3} parent=20 // loop_header
            %s44 = sphi 0, %s48
            %p45 = scmp.ge.s32.totalorder %s44, 1
            %s49 = sphi [#allocation3], [#allocation3]
            %s50 = sphi %s29, %s29
          $region24: #{minibatch_stddev.3} parent=20 // loop_header_branch
            %47 = sbr.rel (%p45) target = $region28
          $region25: #{minibatch_stddev.3} parent=20 // loop_body
            %v51 = vld [vmem:[%s49] sm:%s42]
            %52 = vst [vmem:[%s50] sm:%s42] %v51
          $region26: #{minibatch_stddev.3} parent=20 // loop_footer
            %s48 = sadd.s32 1, %s44
          $region27: #{minibatch_stddev.3} parent=20 // loop_footer_branch
            %43 = sbr.rel target = $region23
          $region28: #{minibatch_stddev.3} parent=20 // loop_exit
            _
        $region21: #{minibatch_stddev.3} parent=12 // pred_fallthru
          _
      $region13: #{minibatch_stddev.3} parent=8 // pred_fallthru
        _
      %292 = vnop
    $region9: #{minibatch_stddev.3} parent=1 // pred_fallthru
      _
    // Predicated region
    $region72: #{minibatch_stddev.3} parent=1 // pred_check
      _
    $region73: #{minibatch_stddev.3} parent=1 // pred_check_branch
      %294 = sbr.rel (0) target = $region75
    $region74: #{minibatch_stddev.3} parent=1 // pred_region
      _
    $region75: #{minibatch_stddev.3} parent=1 // pred_fallthru
      _

// kernel: minibatch_stddev.2
$region0: #{minibatch_stddev.2}
  #allocation0 [shape = 'u32[]', space=smem, size = 0x4, offset = 0x4, fixed_abs, tag = 'smem constant byte address 0x4 - core index']
  #allocation1 [shape = 'u32[72,128]{1,0:T(1,128)}', space=vmem, size = 0x9000, scoped, tag = 'internal scratch']
  %s0 = inlined_call_operand.vmem [shape: f32[2,1024], index: 0, kind: input, shape index: {}]
  %s1 = inlined_call_operand.vmem [shape: f32[2,1280], index: 1, kind: output, shape index: {0}]
  %s2 = inlined_call_operand.vmem [shape: f32[1,8,128], index: 2, kind: output, shape index: {1}]
  %3 = xla_tuple %s1, %s2
  %s4 = sld [smem:[#allocation0]]
  $region88: #{minibatch_stddev.2} parent=0
    _
  %s6 = ssub.s32 1, %s4
  %s7 = scalar_select 0, %s6, %s4
  $region1: #{minibatch_stddev.2} parent=0
    #allocation2 [shape = 'u8[8192]{0}', space=vmem, size = 0x2000, scoped, tag = 'output window, operand 0, single buffered']
    // Predicated region
    $region2: #{minibatch_stddev.2} parent=1 // pred_check
      _
    $region3: #{minibatch_stddev.2} parent=1 // pred_check_branch
      %9 = sbr.rel (0) target = $region5
    $region4: #{minibatch_stddev.2} parent=1 // pred_region
      %s10 = sadd.s32 0, 0
      %s11 = smul.u32 8, %s10
      %p12 = scmp.lt.s32.totalorder %s11, 7
      %s13 = scalar_select %p12, %s11, 7
      %s14 = smul.addr %s13, 2
      %s15 = scalar_lea.vmem %s0, %s14
      %s16 = sadd.s32 0, 0
      %s17 = smul.u32 8, %s16
    $region5: #{minibatch_stddev.2} parent=1 // pred_fallthru
      _
    %s18 = sadd.s32 0, 0
    %s19 = smul.u32 8, %s18
    %p20 = scmp.lt.s32.totalorder %s19, 7
    %s21 = scalar_select %p20, %s19, 7
    %s22 = smul.addr %s21, 2
    %s23 = scalar_lea.vmem %s0, %s22
    %s24 = sadd.s32 0, 0
    %s25 = smul.u32 8, %s24
    %p26 = scmp.lt.s32.totalorder %s25, 7
    %s27 = scalar_select %p26, %s25, 7
    %s28 = smul.addr %s27, 2
    %s29 = scalar_lea.vmem %s0, %s28
    %s30 = sadd.s32 0, 0
    %s31 = smul.u32 8, %s30
    %s32 = sadd.s32 0, 0
    %s33 = smul.u32 8, %s32
    %s34 = ssub.s32 10, %s33
    %p35 = scmp.lt.s32.totalorder %s34, 8
    %s36 = scalar_select %p35, %s34, 8
    %s37 = smul.u32 2, %s36
    %p38 = scmp.eq.s32.totalorder 0, 0
    // Predicated region
    $region6: #{minibatch_stddev.2} parent=1 // pred_check
      %p39 = pneg %p38
    $region7: #{minibatch_stddev.2} parent=1 // pred_check_branch
      %41 = sbr.rel (%p39) target = $region9
    $region8: #{minibatch_stddev.2} parent=1 // pred_region
      %42 = vst [vmem:[%s2] sm:$0xff] 0.0
    $region9: #{minibatch_stddev.2} parent=1 // pred_fallthru
      _
    %v43 = vld [vmem:[%s29] sm:$0xff]
    %v44 = vld [vmem:[%s29 + $0x8] sm:$0xff]
    %45 = vst [vmem:[#allocation2] sm:$0xff] %v43
    %46 = vst [vmem:[#allocation2 + $0x8] sm:$0xff] %v44
    %49 = vst [vmem:[#allocation1] ss:$4 sm:$0xff] %v43
    %s50 = scalar_lea.vmem [#allocation1], 32
    %51 = vst [vmem:[%s50] ss:$4 sm:$0xff] %v44
    %v52 = vld.sshfl [vmem:[#allocation1] sm:$0xff pattern:$0x73625140]
    %v53 = vld.sshfl [vmem:[#allocation1 + $0x8] sm:$0xff pattern:$0x73625140]
    %v54 = vld.sshfl [vmem:[#allocation1 + $0x10] sm:$0xff pattern:$0x73625140]
    %v55 = vld.sshfl [vmem:[#allocation1 + $0x18] sm:$0xff pattern:$0x73625140]
    %v56 = vld.sshfl [vmem:[#allocation1 + $0x20] sm:$0xff pattern:$0x73625140]
    %v57 = vld.sshfl [vmem:[#allocation1 + $0x28] sm:$0xff pattern:$0x73625140]
    %v58 = vld.sshfl [vmem:[#allocation1 + $0x30] sm:$0xff pattern:$0x73625140]
    %v59 = vld.sshfl [vmem:[#allocation1 + $0x38] sm:$0xff pattern:$0x73625140]
    %vm68 = vcmask 1041408
    %v69 = vsel %vm68, %v52, 0.0
    %v70 = vrot.slane %v69, 4
    %v71 = vadd.f32 %v69, %v70
    %v72 = vrot.slane %v71, 2
    %v73 = vadd.f32 %v71, %v72
    %v74 = vrot.slane %v73, 1
    %v75 = vadd.f32 %v73, %v74
    %v76 = vsel %vm68, %v53, 0.0
    %v77 = vrot.slane %v76, 4
    %v78 = vadd.f32 %v76, %v77
    %v79 = vrot.slane %v78, 2
    %v80 = vadd.f32 %v78, %v79
    %v81 = vrot.slane %v80, 1
    %v82 = vadd.f32 %v80, %v81
    %v83 = vsel %vm68, %v54, 0.0
    %v84 = vrot.slane %v83, 4
    %v85 = vadd.f32 %v83, %v84
    %v86 = vrot.slane %v85, 2
    %v87 = vadd.f32 %v85, %v86
    %v88 = vrot.slane %v87, 1
    %v89 = vadd.f32 %v87, %v88
    %v90 = vsel %vm68, %v55, 0.0
    %v91 = vrot.slane %v90, 4
    %v92 = vadd.f32 %v90, %v91
    %v93 = vrot.slane %v92, 2
    %v94 = vadd.f32 %v92, %v93
    %v95 = vrot.slane %v94, 1
    %v96 = vadd.f32 %v94, %v95
    %v97 = vsel %vm68, %v56, 0.0
    %v98 = vrot.slane %v97, 4
    %v99 = vadd.f32 %v97, %v98
    %v100 = vrot.slane %v99, 2
    %v101 = vadd.f32 %v99, %v100
    %v102 = vrot.slane %v101, 1
    %v103 = vadd.f32 %v101, %v102
    %v104 = vsel %vm68, %v57, 0.0
    %v105 = vrot.slane %v104, 4
    %v106 = vadd.f32 %v104, %v105
    %v107 = vrot.slane %v106, 2
    %v108 = vadd.f32 %v106, %v107
    %v109 = vrot.slane %v108, 1
    %v110 = vadd.f32 %v108, %v109
    %v111 = vsel %vm68, %v58, 0.0
    %v112 = vrot.slane %v111, 4
    %v113 = vadd.f32 %v111, %v112
    %v114 = vrot.slane %v113, 2
    %v115 = vadd.f32 %v113, %v114
    %v116 = vrot.slane %v115, 1
    %v117 = vadd.f32 %v115, %v116
    %v118 = vsel %vm68, %v59, 0.0
    %v119 = vrot.slane %v118, 4
    %v120 = vadd.f32 %v118, %v119
    %v121 = vrot.slane %v120, 2
    %v122 = vadd.f32 %v120, %v121
    %v123 = vrot.slane %v122, 1
    %v124 = vadd.f32 %v122, %v123
    %v125 = vmul.f32 %v75, 0.5
    %v126 = vmul.f32 %v82, 0.5
    %v127 = vmul.f32 %v89, 0.5
    %v128 = vmul.f32 %v96, 0.5
    %v129 = vmul.f32 %v103, 0.5
    %v130 = vmul.f32 %v110, 0.5
    %v131 = vmul.f32 %v117, 0.5
    %v132 = vmul.f32 %v124, 0.5
    %v133 = vmul.f32 %v43, %v43
    %v134 = vmul.f32 %v44, %v44
    %137 = vst [vmem:[#allocation1] ss:$4 sm:$0xff] %v133
    %s138 = scalar_lea.vmem [#allocation1], 32
    %139 = vst [vmem:[%s138] ss:$4 sm:$0xff] %v134
    %v140 = vld.sshfl [vmem:[#allocation1] sm:$0xff pattern:$0x73625140]
    %v141 = vld.sshfl [vmem:[#allocation1 + $0x8] sm:$0xff pattern:$0x73625140]
    %v142 = vld.sshfl [vmem:[#allocation1 + $0x10] sm:$0xff pattern:$0x73625140]
    %v143 = vld.sshfl [vmem:[#allocation1 + $0x18] sm:$0xff pattern:$0x73625140]
    %v144 = vld.sshfl [vmem:[#allocation1 + $0x20] sm:$0xff pattern:$0x73625140]
    %v145 = vld.sshfl [vmem:[#allocation1 + $0x28] sm:$0xff pattern:$0x73625140]
    %v146 = vld.sshfl [vmem:[#allocation1 + $0x30] sm:$0xff pattern:$0x73625140]
    %v147 = vld.sshfl [vmem:[#allocation1 + $0x38] sm:$0xff pattern:$0x73625140]
    %v156 = vsel %vm68, %v140, 0.0
    %v157 = vrot.slane %v156, 4
    %v158 = vadd.f32 %v156, %v157
    %v159 = vrot.slane %v158, 2
    %v160 = vadd.f32 %v158, %v159
    %v161 = vrot.slane %v160, 1
    %v162 = vadd.f32 %v160, %v161
    %v163 = vsel %vm68, %v141, 0.0
    %v164 = vrot.slane %v163, 4
    %v165 = vadd.f32 %v163, %v164
    %v166 = vrot.slane %v165, 2
    %v167 = vadd.f32 %v165, %v166
    %v168 = vrot.slane %v167, 1
    %v169 = vadd.f32 %v167, %v168
    %v170 = vsel %vm68, %v142, 0.0
    %v171 = vrot.slane %v170, 4
    %v172 = vadd.f32 %v170, %v171
    %v173 = vrot.slane %v172, 2
    %v174 = vadd.f32 %v172, %v173
    %v175 = vrot.slane %v174, 1
    %v176 = vadd.f32 %v174, %v175
    %v177 = vsel %vm68, %v143, 0.0
    %v178 = vrot.slane %v177, 4
    %v179 = vadd.f32 %v177, %v178
    %v180 = vrot.slane %v179, 2
    %v181 = vadd.f32 %v179, %v180
    %v182 = vrot.slane %v181, 1
    %v183 = vadd.f32 %v181, %v182
    %v184 = vsel %vm68, %v144, 0.0
    %v185 = vrot.slane %v184, 4
    %v186 = vadd.f32 %v184, %v185
    %v187 = vrot.slane %v186, 2
    %v188 = vadd.f32 %v186, %v187
    %v189 = vrot.slane %v188, 1
    %v190 = vadd.f32 %v188, %v189
    %v191 = vsel %vm68, %v145, 0.0
    %v192 = vrot.slane %v191, 4
    %v193 = vadd.f32 %v191, %v192
    %v194 = vrot.slane %v193, 2
    %v195 = vadd.f32 %v193, %v194
    %v196 = vrot.slane %v195, 1
    %v197 = vadd.f32 %v195, %v196
    %v198 = vsel %vm68, %v146, 0.0
    %v199 = vrot.slane %v198, 4
    %v200 = vadd.f32 %v198, %v199
    %v201 = vrot.slane %v200, 2
    %v202 = vadd.f32 %v200, %v201
    %v203 = vrot.slane %v202, 1
    %v204 = vadd.f32 %v202, %v203
    %v205 = vsel %vm68, %v147, 0.0
    %v206 = vrot.slane %v205, 4
    %v207 = vadd.f32 %v205, %v206
    %v208 = vrot.slane %v207, 2
    %v209 = vadd.f32 %v207, %v208
    %v210 = vrot.slane %v209, 1
    %v211 = vadd.f32 %v209, %v210
    %v212 = vmul.f32 %v162, 0.5
    %v213 = vmul.f32 %v169, 0.5
    %v214 = vmul.f32 %v176, 0.5
    %v215 = vmul.f32 %v183, 0.5
    %v216 = vmul.f32 %v190, 0.5
    %v217 = vmul.f32 %v197, 0.5
    %v218 = vmul.f32 %v204, 0.5
    %v219 = vmul.f32 %v211, 0.5
    %v220 = vmul.f32 %v125, %v125
    %v221 = vmul.f32 %v126, %v126
    %v222 = vmul.f32 %v127, %v127
    %v223 = vmul.f32 %v128, %v128
    %v224 = vmul.f32 %v129, %v129
    %v225 = vmul.f32 %v130, %v130
    %v226 = vmul.f32 %v131, %v131
    %v227 = vmul.f32 %v132, %v132
    %v228 = vsub.f32 %v212, %v220
    %v229 = vsub.f32 %v213, %v221
    %v230 = vsub.f32 %v214, %v222
    %v231 = vsub.f32 %v215, %v223
    %v232 = vsub.f32 %v216, %v224
    %v233 = vsub.f32 %v217, %v225
    %v234 = vsub.f32 %v218, %v226
    %v235 = vsub.f32 %v219, %v227
    %v236 = vmax.f32 %v228, 0.0
    %v237 = vmax.f32 %v229, 0.0
    %v238 = vmax.f32 %v230, 0.0
    %v239 = vmax.f32 %v231, 0.0
    %v240 = vmax.f32 %v232, 0.0
    %v241 = vmax.f32 %v233, 0.0
    %v242 = vmax.f32 %v234, 0.0
    %v243 = vmax.f32 %v235, 0.0
    %v244 = vadd.f32 %v236, 1e-08
    %v245 = vadd.f32 %v237, 1e-08
    %v246 = vadd.f32 %v238, 1e-08
    %v247 = vadd.f32 %v239, 1e-08
    %v248 = vadd.f32 %v240, 1e-08
    %v249 = vadd.f32 %v241, 1e-08
    %v250 = vadd.f32 %v242, 1e-08
    %v251 = vadd.f32 %v243, 1e-08
    %v252 = vrsqrt.pop %v244
    %v253 = vmul.f32 %v252, %v244
    %v254 = vmul.f32 %v253, %v252
    %v255 = vmul.f32 0.5, %v254
    %v256 = vsub.f32 1.5, %v255
    %v257 = vmul.f32 %v252, %v256
    %v258 = vmul.f32 %v244, %v257
    %vm259 = vcmp.eq.f32.partialorder %v244, inf
    %v260 = vsel %vm259, %v244, %v258
    %vm261 = vcmp.eq.f32.partialorder %v244, 0.0
    %v262 = vand.u32 %v244, 2147483648
    %v263 = vsel %vm261, %v262, %v260
    %v264 = vrsqrt.pop %v245
    %v265 = vmul.f32 %v264, %v245
    %v266 = vmul.f32 %v265, %v264
    %v267 = vmul.f32 0.5, %v266
    %v268 = vsub.f32 1.5, %v267
    %v269 = vmul.f32 %v264, %v268
    %v270 = vmul.f32 %v245, %v269
    %vm271 = vcmp.eq.f32.partialorder %v245, inf
    %v272 = vsel %vm271, %v245, %v270
    %vm273 = vcmp.eq.f32.partialorder %v245, 0.0
    %v274 = vand.u32 %v245, 2147483648
    %v275 = vsel %vm273, %v274, %v272
    %v276 = vrsqrt.pop %v246
    %v277 = vmul.f32 %v276, %v246
    %v278 = vmul.f32 %v277, %v276
    %v279 = vmul.f32 0.5, %v278
    %v280 = vsub.f32 1.5, %v279
    %v281 = vmul.f32 %v276, %v280
    %v282 = vmul.f32 %v246, %v281
    %vm283 = vcmp.eq.f32.partialorder %v246, inf
    %v284 = vsel %vm283, %v246, %v282
    %vm285 = vcmp.eq.f32.partialorder %v246, 0.0
    %v286 = vand.u32 %v246, 2147483648
    %v287 = vsel %vm285, %v286, %v284
    %v288 = vrsqrt.pop %v247
    %v289 = vmul.f32 %v288, %v247
    %v290 = vmul.f32 %v289, %v288
    %v291 = vmul.f32 0.5, %v290
    %v292 = vsub.f32 1.5, %v291
    %v293 = vmul.f32 %v288, %v292
    %v294 = vmul.f32 %v247, %v293
    %vm295 = vcmp.eq.f32.partialorder %v247, inf
    %v296 = vsel %vm295, %v247, %v294
    %vm297 = vcmp.eq.f32.partialorder %v247, 0.0
    %v298 = vand.u32 %v247, 2147483648
    %v299 = vsel %vm297, %v298, %v296
    %v300 = vrsqrt.pop %v248
    %v301 = vmul.f32 %v300, %v248
    %v302 = vmul.f32 %v301, %v300
    %v303 = vmul.f32 0.5, %v302
    %v304 = vsub.f32 1.5, %v303
    %v305 = vmul.f32 %v300, %v304
    %v306 = vmul.f32 %v248, %v305
    %vm307 = vcmp.eq.f32.partialorder %v248, inf
    %v308 = vsel %vm307, %v248, %v306
    %vm309 = vcmp.eq.f32.partialorder %v248, 0.0
    %v310 = vand.u32 %v248, 2147483648
    %v311 = vsel %vm309, %v310, %v308
    %v312 = vrsqrt.pop %v249
    %v313 = vmul.f32 %v312, %v249
    %v314 = vmul.f32 %v313, %v312
    %v315 = vmul.f32 0.5, %v314
    %v316 = vsub.f32 1.5, %v315
    %v317 = vmul.f32 %v312, %v316
    %v318 = vmul.f32 %v249, %v317
    %vm319 = vcmp.eq.f32.partialorder %v249, inf
    %v320 = vsel %vm319, %v249, %v318
    %vm321 = vcmp.eq.f32.partialorder %v249, 0.0
    %v322 = vand.u32 %v249, 2147483648
    %v323 = vsel %vm321, %v322, %v320
    %v324 = vrsqrt.pop %v250
    %v325 = vmul.f32 %v324, %v250
    %v326 = vmul.f32 %v325, %v324
    %v327 = vmul.f32 0.5, %v326
    %v328 = vsub.f32 1.5, %v327
    %v329 = vmul.f32 %v324, %v328
    %v330 = vmul.f32 %v250, %v329
    %vm331 = vcmp.eq.f32.partialorder %v250, inf
    %v332 = vsel %vm331, %v250, %v330
    %vm333 = vcmp.eq.f32.partialorder %v250, 0.0
    %v334 = vand.u32 %v250, 2147483648
    %v335 = vsel %vm333, %v334, %v332
    %v336 = vrsqrt.pop %v251
    %v337 = vmul.f32 %v336, %v251
    %v338 = vmul.f32 %v337, %v336
    %v339 = vmul.f32 0.5, %v338
    %v340 = vsub.f32 1.5, %v339
    %v341 = vmul.f32 %v336, %v340
    %v342 = vmul.f32 %v251, %v341
    %vm343 = vcmp.eq.f32.partialorder %v251, inf
    %v344 = vsel %vm343, %v251, %v342
    %vm345 = vcmp.eq.f32.partialorder %v251, 0.0
    %v346 = vand.u32 %v251, 2147483648
    %v347 = vsel %vm345, %v346, %v344
    %v348 = vld [vmem:[%s2] sm:$0xff]
    %vm349 = vcmask 1040384
    %v350 = vsel %vm349, %v263, 0.0
    %v351 = vsel %vm349, %v275, 0.0
    %v352 = vadd.f32 %v350, %v351
    %v353 = vsel %vm349, %v287, 0.0
    %v354 = vadd.f32 %v352, %v353
    %v355 = vsel %vm349, %v299, 0.0
    %v356 = vadd.f32 %v354, %v355
    %v357 = vsel %vm349, %v311, 0.0
    %v358 = vadd.f32 %v356, %v357
    %v359 = vsel %vm349, %v323, 0.0
    %v360 = vadd.f32 %v358, %v359
    %v361 = vsel %vm349, %v335, 0.0
    %v362 = vadd.f32 %v360, %v361
    %v363 = vsel %vm349, %v347, 0.0
    %v364 = vadd.f32 %v362, %v363
    %365 = vadd.xlane.f32.xlu0 %v364
    %v366 = vpop.xlane.xlu0 %365
    %v367 = vrot.slane %v366, 4
    %v368 = vadd.f32 %v366, %v367
    %v369 = vrot.slane %v368, 2
    %v370 = vadd.f32 %v368, %v369
    %v371 = vrot.slane %v370, 1
    %v372 = vadd.f32 %v370, %v371
    %s373 = vtos %v372
    %v374 = vstv %s373
    %v375 = vadd.f32 %v348, %v374
    %376 = vst [vmem:[%s2] sm:$0xff] %v375
    // Predicated region
    $region10: #{minibatch_stddev.2} parent=1 // pred_check
      _
    $region11: #{minibatch_stddev.2} parent=1 // pred_check_branch
      %378 = sbr.rel (0) target = $region13
    $region12: #{minibatch_stddev.2} parent=1 // pred_region
      %s379 = sadd.s32 0, 0
      %s380 = smul.u32 8, %s379
      %s381 = ssub.s32 10, %s380
      %p382 = scmp.lt.s32.totalorder %s381, 8
      %s383 = scalar_select %p382, %s381, 8
      %s384 = smul.u32 2, %s383
      %p385 = scmp.ne.s32.totalorder 0, %s384
      %s386 = smul.addr %s380, 2
      %s387 = scalar_lea.vmem %s1, %s386
      %s388 = smul.u32 %s383, 2
      // Predicated region
      $region14: #{minibatch_stddev.2} parent=12 // pred_check
        %p389 = pneg %p385
      $region15: #{minibatch_stddev.2} parent=12 // pred_check_branch
        %391 = sbr.rel (%p389) target = $region17
      $region16: #{minibatch_stddev.2} parent=12 // pred_region
        %p392 = scmp.lt.u32.totalorder %s388, 8
        %p393 = pneg %p392
        // Predicated region
        $region18: #{minibatch_stddev.2} parent=16 // pred_check
          _
        $region19: #{minibatch_stddev.2} parent=16 // pred_check_branch
          %395 = sbr.rel (%p392) target = $region21
        $region20: #{minibatch_stddev.2} parent=16 // pred_region
          %s411 = sand.u32 %s388, 7
          %p412 = scmp.eq.s32.totalorder %s411, 0
          // Predicated region
          $region33: #{minibatch_stddev.2} parent=20 // pred_check
            %p413 = pneg %p412
          $region34: #{minibatch_stddev.2} parent=20 // pred_check_branch
            %415 = sbr.rel (%p413) target = $region36
          $region35: #{minibatch_stddev.2} parent=20 // pred_region
            %s416 = sshrl.u32 %s388, 3
            %s417 = sshrl.u32 %s416, 5
            // While loop
            $region37: #{minibatch_stddev.2} parent=35 // loop_pre_header
              _
            $region38: #{minibatch_stddev.2} parent=35 // loop_header
              %s419 = sphi 0, %s421
              %p420 = scmp.ge.s32.totalorder %s419, %s417
              %s424 = sphi 0, %s493
              %s425 = sphi [#allocation2], %s496
              %s426 = sphi %s387, %s497
            $region39: #{minibatch_stddev.2} parent=35 // loop_header_branch
              %423 = sbr.rel (%p420) target = $region43
            $region40: #{minibatch_stddev.2} parent=35 // loop_body
              %v427 = vld [vmem:[%s425] sm:$0xff]
              %428 = vst [vmem:[%s426] sm:$0xff] %v427
              %v429 = vld [vmem:[%s425 + $0x8] sm:$0xff]
              %430 = vst [vmem:[%s426 + $0x8] sm:$0xff] %v429
              %v431 = vld [vmem:[%s425 + $0x10] sm:$0xff]
              %432 = vst [vmem:[%s426 + $0x10] sm:$0xff] %v431
              %v433 = vld [vmem:[%s425 + $0x18] sm:$0xff]
              %434 = vst [vmem:[%s426 + $0x18] sm:$0xff] %v433
              %v435 = vld [vmem:[%s425 + $0x20] sm:$0xff]
              %436 = vst [vmem:[%s426 + $0x20] sm:$0xff] %v435
              %v437 = vld [vmem:[%s425 + $0x28] sm:$0xff]
              %438 = vst [vmem:[%s426 + $0x28] sm:$0xff] %v437
              %v439 = vld [vmem:[%s425 + $0x30] sm:$0xff]
              %440 = vst [vmem:[%s426 + $0x30] sm:$0xff] %v439
              %v441 = vld [vmem:[%s425 + $0x38] sm:$0xff]
              %442 = vst [vmem:[%s426 + $0x38] sm:$0xff] %v441
              %v443 = vld [vmem:[%s425 + $0x40] sm:$0xff]
              %444 = vst [vmem:[%s426 + $0x40] sm:$0xff] %v443
              %v445 = vld [vmem:[%s425 + $0x48] sm:$0xff]
              %446 = vst [vmem:[%s426 + $0x48] sm:$0xff] %v445
              %v447 = vld [vmem:[%s425 + $0x50] sm:$0xff]
              %448 = vst [vmem:[%s426 + $0x50] sm:$0xff] %v447
              %v449 = vld [vmem:[%s425 + $0x58] sm:$0xff]
              %450 = vst [vmem:[%s426 + $0x58] sm:$0xff] %v449
              %v451 = vld [vmem:[%s425 + $0x60] sm:$0xff]
              %452 = vst [vmem:[%s426 + $0x60] sm:$0xff] %v451
              %v453 = vld [vmem:[%s425 + $0x68] sm:$0xff]
              %454 = vst [vmem:[%s426 + $0x68] sm:$0xff] %v453
              %v455 = vld [vmem:[%s425 + $0x70] sm:$0xff]
              %456 = vst [vmem:[%s426 + $0x70] sm:$0xff] %v455
              %v457 = vld [vmem:[%s425 + $0x78] sm:$0xff]
              %458 = vst [vmem:[%s426 + $0x78] sm:$0xff] %v457
              %v459 = vld [vmem:[%s425 + $0x80] sm:$0xff]
              %460 = vst [vmem:[%s426 + $0x80] sm:$0xff] %v459
              %v461 = vld [vmem:[%s425 + $0x88] sm:$0xff]
              %462 = vst [vmem:[%s426 + $0x88] sm:$0xff] %v461
              %v463 = vld [vmem:[%s425 + $0x90] sm:$0xff]
              %464 = vst [vmem:[%s426 + $0x90] sm:$0xff] %v463
              %v465 = vld [vmem:[%s425 + $0x98] sm:$0xff]
              %466 = vst [vmem:[%s426 + $0x98] sm:$0xff] %v465
              %v467 = vld [vmem:[%s425 + $0xa0] sm:$0xff]
              %468 = vst [vmem:[%s426 + $0xa0] sm:$0xff] %v467
              %v469 = vld [vmem:[%s425 + $0xa8] sm:$0xff]
              %470 = vst [vmem:[%s426 + $0xa8] sm:$0xff] %v469
              %v471 = vld [vmem:[%s425 + $0xb0] sm:$0xff]
              %472 = vst [vmem:[%s426 + $0xb0] sm:$0xff] %v471
              %v473 = vld [vmem:[%s425 + $0xb8] sm:$0xff]
              %474 = vst [vmem:[%s426 + $0xb8] sm:$0xff] %v473
              %v475 = vld [vmem:[%s425 + $0xc0] sm:$0xff]
              %476 = vst [vmem:[%s426 + $0xc0] sm:$0xff] %v475
              %v477 = vld [vmem:[%s425 + $0xc8] sm:$0xff]
              %478 = vst [vmem:[%s426 + $0xc8] sm:$0xff] %v477
              %v479 = vld [vmem:[%s425 + $0xd0] sm:$0xff]
              %480 = vst [vmem:[%s426 + $0xd0] sm:$0xff] %v479
              %v481 = vld [vmem:[%s425 + $0xd8] sm:$0xff]
              %482 = vst [vmem:[%s426 + $0xd8] sm:$0xff] %v481
              %v483 = vld [vmem:[%s425 + $0xe0] sm:$0xff]
              %484 = vst [vmem:[%s426 + $0xe0] sm:$0xff] %v483
              %v485 = vld [vmem:[%s425 + $0xe8] sm:$0xff]
              %486 = vst [vmem:[%s426 + $0xe8] sm:$0xff] %v485
              %v487 = vld [vmem:[%s425 + $0xf0] sm:$0xff]
              %488 = vst [vmem:[%s426 + $0xf0] sm:$0xff] %v487
              %v489 = vld [vmem:[%s425 + $0xf8] sm:$0xff]
              %490 = vst [vmem:[%s426 + $0xf8] sm:$0xff] %v489
              %s491 = sadd.s32 1, %s424
              %p492 = scmp.ge.s32.totalorder %s491, %s417
              %s493 = scalar_select %p492, 0, %s491
              %s494 = smul.u32 %s493, 256
              %s495 = smul.u32 %s493, 256
              %s496 = scalar_lea.vmem [#allocation2], %s494
              %s497 = scalar_lea.vmem %s387, %s495
            $region41: #{minibatch_stddev.2} parent=35 // loop_footer
              %s421 = sadd.s32 %s419, 1
            $region42: #{minibatch_stddev.2} parent=35 // loop_footer_branch
              %418 = sbr.rel target = $region38
            $region43: #{minibatch_stddev.2} parent=35 // loop_exit
              _
            %s498 = sshrl.u32 %s416, 5
            %s499 = sand.u32 %s416, 31
            %s500 = smul.u32 %s498, 32
            %s501 = smul.u32 8, %s500
            %s502 = scalar_lea.vmem [#allocation2], %s501
            %s503 = smul.u32 8, %s500
            %s504 = scalar_lea.vmem %s387, %s503
            // While loop
            $region44: #{minibatch_stddev.2} parent=35 // loop_pre_header
              _
            $region45: #{minibatch_stddev.2} parent=35 // loop_header
              %s506 = sphi 0, %s508
              %p507 = scmp.ge.s32.totalorder %s506, %s499
              %s511 = sphi 0, %s518
              %s512 = sphi %s502, %s521
              %s513 = sphi %s504, %s522
            $region46: #{minibatch_stddev.2} parent=35 // loop_header_branch
              %510 = sbr.rel (%p507) target = $region50
            $region47: #{minibatch_stddev.2} parent=35 // loop_body
              %v514 = vld [vmem:[%s512] sm:$0xff]
              %515 = vst [vmem:[%s513] sm:$0xff] %v514
              %s516 = sadd.s32 1, %s511
              %p517 = scmp.ge.s32.totalorder %s516, %s499
              %s518 = scalar_select %p517, 0, %s516
              %s519 = smul.u32 %s518, 8
              %s520 = smul.u32 %s518, 8
              %s521 = scalar_lea.vmem %s502, %s519 [#allocation2]
              %s522 = scalar_lea.vmem %s504, %s520
            $region48: #{minibatch_stddev.2} parent=35 // loop_footer
              %s508 = sadd.s32 %s506, 1
            $region49: #{minibatch_stddev.2} parent=35 // loop_footer_branch
              %505 = sbr.rel target = $region45
            $region50: #{minibatch_stddev.2} parent=35 // loop_exit
              _
          $region36: #{minibatch_stddev.2} parent=20 // pred_fallthru
            _
          %p523 = pneg %p412
          // Predicated region
          $region51: #{minibatch_stddev.2} parent=20 // pred_check
            _
          $region52: #{minibatch_stddev.2} parent=20 // pred_check_branch
            %525 = sbr.rel (%p412) target = $region54
          $region53: #{minibatch_stddev.2} parent=20 // pred_region
            %s526 = sand.u32 %s388, 7
            %s527 = ssub.s32 %s388, %s526
            %s528 = scalar_lea.vmem [#allocation2], %s527
            %s529 = ssub.s32 %s388, %s526
            %s530 = scalar_lea.vmem %s387, %s529
            %s531 = sshrl.u32 %s388, 3
            %s532 = sshrl.u32 %s531, 5
            // While loop
            $region55: #{minibatch_stddev.2} parent=53 // loop_pre_header
              _
            $region56: #{minibatch_stddev.2} parent=53 // loop_header
              %s534 = sphi 0, %s536
              %p535 = scmp.ge.s32.totalorder %s534, %s532
              %s539 = sphi 0, %s608
              %s540 = sphi [#allocation2], %s611
              %s541 = sphi %s387, %s612
            $region57: #{minibatch_stddev.2} parent=53 // loop_header_branch
              %538 = sbr.rel (%p535) target = $region61
            $region58: #{minibatch_stddev.2} parent=53 // loop_body
              %v542 = vld [vmem:[%s540] sm:$0xff]
              %543 = vst [vmem:[%s541] sm:$0xff] %v542
              %v544 = vld [vmem:[%s540 + $0x8] sm:$0xff]
              %545 = vst [vmem:[%s541 + $0x8] sm:$0xff] %v544
              %v546 = vld [vmem:[%s540 + $0x10] sm:$0xff]
              %547 = vst [vmem:[%s541 + $0x10] sm:$0xff] %v546
              %v548 = vld [vmem:[%s540 + $0x18] sm:$0xff]
              %549 = vst [vmem:[%s541 + $0x18] sm:$0xff] %v548
              %v550 = vld [vmem:[%s540 + $0x20] sm:$0xff]
              %551 = vst [vmem:[%s541 + $0x20] sm:$0xff] %v550
              %v552 = vld [vmem:[%s540 + $0x28] sm:$0xff]
              %553 = vst [vmem:[%s541 + $0x28] sm:$0xff] %v552
              %v554 = vld [vmem:[%s540 + $0x30] sm:$0xff]
              %555 = vst [vmem:[%s541 + $0x30] sm:$0xff] %v554
              %v556 = vld [vmem:[%s540 + $0x38] sm:$0xff]
              %557 = vst [vmem:[%s541 + $0x38] sm:$0xff] %v556
              %v558 = vld [vmem:[%s540 + $0x40] sm:$0xff]
              %559 = vst [vmem:[%s541 + $0x40] sm:$0xff] %v558
              %v560 = vld [vmem:[%s540 + $0x48] sm:$0xff]
              %561 = vst [vmem:[%s541 + $0x48] sm:$0xff] %v560
              %v562 = vld [vmem:[%s540 + $0x50] sm:$0xff]
              %563 = vst [vmem:[%s541 + $0x50] sm:$0xff] %v562
              %v564 = vld [vmem:[%s540 + $0x58] sm:$0xff]
              %565 = vst [vmem:[%s541 + $0x58] sm:$0xff] %v564
              %v566 = vld [vmem:[%s540 + $0x60] sm:$0xff]
              %567 = vst [vmem:[%s541 + $0x60] sm:$0xff] %v566
              %v568 = vld [vmem:[%s540 + $0x68] sm:$0xff]
              %569 = vst [vmem:[%s541 + $0x68] sm:$0xff] %v568
              %v570 = vld [vmem:[%s540 + $0x70] sm:$0xff]
              %571 = vst [vmem:[%s541 + $0x70] sm:$0xff] %v570
              %v572 = vld [vmem:[%s540 + $0x78] sm:$0xff]
              %573 = vst [vmem:[%s541 + $0x78] sm:$0xff] %v572
              %v574 = vld [vmem:[%s540 + $0x80] sm:$0xff]
              %575 = vst [vmem:[%s541 + $0x80] sm:$0xff] %v574
              %v576 = vld [vmem:[%s540 + $0x88] sm:$0xff]
              %577 = vst [vmem:[%s541 + $0x88] sm:$0xff] %v576
              %v578 = vld [vmem:[%s540 + $0x90] sm:$0xff]
              %579 = vst [vmem:[%s541 + $0x90] sm:$0xff] %v578
              %v580 = vld [vmem:[%s540 + $0x98] sm:$0xff]
              %581 = vst [vmem:[%s541 + $0x98] sm:$0xff] %v580
              %v582 = vld [vmem:[%s540 + $0xa0] sm:$0xff]
              %583 = vst [vmem:[%s541 + $0xa0] sm:$0xff] %v582
              %v584 = vld [vmem:[%s540 + $0xa8] sm:$0xff]
              %585 = vst [vmem:[%s541 + $0xa8] sm:$0xff] %v584
              %v586 = vld [vmem:[%s540 + $0xb0] sm:$0xff]
              %587 = vst [vmem:[%s541 + $0xb0] sm:$0xff] %v586
              %v588 = vld [vmem:[%s540 + $0xb8] sm:$0xff]
              %589 = vst [vmem:[%s541 + $0xb8] sm:$0xff] %v588
              %v590 = vld [vmem:[%s540 + $0xc0] sm:$0xff]
              %591 = vst [vmem:[%s541 + $0xc0] sm:$0xff] %v590
              %v592 = vld [vmem:[%s540 + $0xc8] sm:$0xff]
              %593 = vst [vmem:[%s541 + $0xc8] sm:$0xff] %v592
              %v594 = vld [vmem:[%s540 + $0xd0] sm:$0xff]
              %595 = vst [vmem:[%s541 + $0xd0] sm:$0xff] %v594
              %v596 = vld [vmem:[%s540 + $0xd8] sm:$0xff]
              %597 = vst [vmem:[%s541 + $0xd8] sm:$0xff] %v596
              %v598 = vld [vmem:[%s540 + $0xe0] sm:$0xff]
              %599 = vst [vmem:[%s541 + $0xe0] sm:$0xff] %v598
              %v600 = vld [vmem:[%s540 + $0xe8] sm:$0xff]
              %601 = vst [vmem:[%s541 + $0xe8] sm:$0xff] %v600
              %v602 = vld [vmem:[%s540 + $0xf0] sm:$0xff]
              %603 = vst [vmem:[%s541 + $0xf0] sm:$0xff] %v602
              %v604 = vld [vmem:[%s540 + $0xf8] sm:$0xff]
              %605 = vst [vmem:[%s541 + $0xf8] sm:$0xff] %v604
              %s606 = sadd.s32 1, %s539
              %p607 = scmp.ge.s32.totalorder %s606, %s532
              %s608 = scalar_select %p607, 0, %s606
              %s609 = smul.u32 %s608, 256
              %s610 = smul.u32 %s608, 256
              %s611 = scalar_lea.vmem [#allocation2], %s609
              %s612 = scalar_lea.vmem %s387, %s610
            $region59: #{minibatch_stddev.2} parent=53 // loop_footer
              %s536 = sadd.s32 %s534, 1
            $region60: #{minibatch_stddev.2} parent=53 // loop_footer_branch
              %533 = sbr.rel target = $region56
            $region61: #{minibatch_stddev.2} parent=53 // loop_exit
              _
            %s613 = sshrl.u32 %s531, 5
            %s614 = sand.u32 %s531, 31
            %s615 = smul.u32 %s613, 32
            %s616 = smul.u32 8, %s615
            %s617 = scalar_lea.vmem [#allocation2], %s616
            %s618 = smul.u32 8, %s615
            %s619 = scalar_lea.vmem %s387, %s618
            // While loop
            $region62: #{minibatch_stddev.2} parent=53 // loop_pre_header
              _
            $region63: #{minibatch_stddev.2} parent=53 // loop_header
              %s621 = sphi 0, %s623
              %p622 = scmp.ge.s32.totalorder %s621, %s614
              %s626 = sphi 0, %s633
              %s627 = sphi %s617, %s636
              %s628 = sphi %s619, %s637
            $region64: #{minibatch_stddev.2} parent=53 // loop_header_branch
              %625 = sbr.rel (%p622) target = $region68
            $region65: #{minibatch_stddev.2} parent=53 // loop_body
              %v629 = vld [vmem:[%s627] sm:$0xff]
              %630 = vst [vmem:[%s628] sm:$0xff] %v629
              %s631 = sadd.s32 1, %s626
              %p632 = scmp.ge.s32.totalorder %s631, %s614
              %s633 = scalar_select %p632, 0, %s631
              %s634 = smul.u32 %s633, 8
              %s635 = smul.u32 %s633, 8
              %s636 = scalar_lea.vmem %s617, %s634 [#allocation2]
              %s637 = scalar_lea.vmem %s619, %s635
            $region66: #{minibatch_stddev.2} parent=53 // loop_footer
              %s623 = sadd.s32 %s621, 1
            $region67: #{minibatch_stddev.2} parent=53 // loop_footer_branch
              %620 = sbr.rel target = $region63
            $region68: #{minibatch_stddev.2} parent=53 // loop_exit
              _
            %s638 = sshll.u32 1, %s526
            %s639 = ssub.s32 %s638, 1
            loop: start=0, step=1, limit=1
            $region69: #{minibatch_stddev.2} parent=53 // loop_pre_header
              _
            $region70: #{minibatch_stddev.2} parent=53 // loop_header
              %s641 = sphi 0, %s645
              %p642 = scmp.ge.s32.totalorder %s641, 1
              %s646 = sphi %s528, %s528
              %s647 = sphi %s530, %s530
            $region71: #{minibatch_stddev.2} parent=53 // loop_header_branch
              %644 = sbr.rel (%p642) target = $region75
            $region72: #{minibatch_stddev.2} parent=53 // loop_body
              %v648 = vld [vmem:[%s646] sm:%s639]
              %649 = vst [vmem:[%s647] sm:%s639] %v648
            $region73: #{minibatch_stddev.2} parent=53 // loop_footer
              %s645 = sadd.s32 1, %s641
            $region74: #{minibatch_stddev.2} parent=53 // loop_footer_branch
              %640 = sbr.rel target = $region70
            $region75: #{minibatch_stddev.2} parent=53 // loop_exit
              _
          $region54: #{minibatch_stddev.2} parent=20 // pred_fallthru
            _
        $region21: #{minibatch_stddev.2} parent=16 // pred_fallthru
          _
        // Predicated region
        $region22: #{minibatch_stddev.2} parent=16 // pred_check
          %p396 = pneg %p392
        $region23: #{minibatch_stddev.2} parent=16 // pred_check_branch
          %398 = sbr.rel (%p396) target = $region25
        $region24: #{minibatch_stddev.2} parent=16 // pred_region
          %s399 = sshll.u32 1, %s388
          %s400 = ssub.s32 %s399, 1
          loop: start=0, step=1, limit=1
          $region26: #{minibatch_stddev.2} parent=24 // loop_pre_header
            _
          $region27: #{minibatch_stddev.2} parent=24 // loop_header
            %s402 = sphi 0, %s406
            %p403 = scmp.ge.s32.totalorder %s402, 1
            %s407 = sphi [#allocation2], [#allocation2]
            %s408 = sphi %s387, %s387
          $region28: #{minibatch_stddev.2} parent=24 // loop_header_branch
            %405 = sbr.rel (%p403) target = $region32
          $region29: #{minibatch_stddev.2} parent=24 // loop_body
            %v409 = vld [vmem:[%s407] sm:%s400]
            %410 = vst [vmem:[%s408] sm:%s400] %v409
          $region30: #{minibatch_stddev.2} parent=24 // loop_footer
            %s406 = sadd.s32 1, %s402
          $region31: #{minibatch_stddev.2} parent=24 // loop_footer_branch
            %401 = sbr.rel target = $region27
          $region32: #{minibatch_stddev.2} parent=24 // loop_exit
            _
        $region25: #{minibatch_stddev.2} parent=16 // pred_fallthru
          _
      $region17: #{minibatch_stddev.2} parent=12 // pred_fallthru
        _
      %650 = vnop
    $region13: #{minibatch_stddev.2} parent=1 // pred_fallthru
      _
    // Predicated region
    $region76: #{minibatch_stddev.2} parent=1 // pred_check
      _
    $region77: #{minibatch_stddev.2} parent=1 // pred_check_branch
      %652 = sbr.rel (0) target = $region79
    $region78: #{minibatch_stddev.2} parent=1 // pred_region
      _
    $region79: #{minibatch_stddev.2} parent=1 // pred_fallthru
      _
    // Predicated region
    $region80: #{minibatch_stddev.2} parent=1 // pred_check
      _
    $region81: #{minibatch_stddev.2} parent=1 // pred_check_branch
      %654 = sbr.rel (0) target = $region83
    $region82: #{minibatch_stddev.2} parent=1 // pred_region
      _
    $region83: #{minibatch_stddev.2} parent=1 // pred_fallthru
      _
    // Predicated region
    $region84: #{minibatch_stddev.2} parent=1 // pred_check
      _
    $region85: #{minibatch_stddev.2} parent=1 // pred_check_branch
      %656 = sbr.rel (0) target = $region87
    $region86: #{minibatch_stddev.2} parent=1 // pred_region
      _
    $region87: #{minibatch_stddev.2} parent=1 // pred_fallthru
      _

</llo_original>
